<compile_context>
chip_gen: v6e
topology: v6e:2x2x1
jax: 0.10.0
libtpu: 0.0.40
codegen_flags: <defaults>
</compile_context>

<pallas_src>
import functools

import jax
import jax.numpy as jnp
from jax.experimental import pallas as pl
from jax.experimental.pallas import tpu as pltpu


def _round_up(x, m):
    return (x + m - 1) // m * m


def _vmem_estimate(bt, lc, d, f_pad, out_pad, k_max):
    """Rough per-tile VMEM working-set estimate in bytes."""
    halo = lc + k_max - 1
    x_blk = halo * bt * d * 2 * 2            # bf16 shifted slab, double-buffered
    acc = lc * bt * f_pad * 4 * 2            # f32 conv acc + masked temp
    w = k_max * d * f_pad * 2 * 2            # fused conv weight (bf16)
    mask = lc * f_pad * 4 * 2                # validity mask block
    wp = f_pad * out_pad * 2 * 2             # projection weight (bf16)
    small = (f_pad + out_pad) * 4 * 4        # biases
    out = bt * out_pad * 4 * 2               # output block
    scr = bt * f_pad * 4                     # running-max scratch
    return x_blk + acc + w + mask + wp + small + out + scr


def _choose_tiles(B, d, f_pad, out_pad, l_out_real, k_max,
                  batch_tile=None, time_chunk=None, vmem_budget=10 << 20):
    """Pick (batch tile, time chunk) so the working set fits a portable budget."""
    b8 = _round_up(B, 8)
    bt = batch_tile if batch_tile is not None else min(128, b8)
    lc = time_chunk if time_chunk is not None else min(_round_up(l_out_real, 8), 128)
    assert bt % 8 == 0 and lc % 8 == 0
    if batch_tile is None and time_chunk is None:
        while lc > 8 and _vmem_estimate(bt, lc, d, f_pad, out_pad, k_max) > vmem_budget:
            lc -= 8
        while bt > 8 and _vmem_estimate(bt, lc, d, f_pad, out_pad, k_max) > vmem_budget:
            bt -= 8
    return bt, lc


def _textcnn_kernel(bt, lc, k_max, x_ref, w_ref, mask_ref, bias_ref, wp_ref,
                    bp_ref, out_ref, max_ref):
    """One (batch tile, time chunk) grid step.

    x_ref:    ((lc+k_max-1)*bt, D)  bf16  shifted slab, row = t_local*bt + b
    w_ref:    (k_max, D, F_pad)     bf16  fused banks, taps zero-padded to k_max
    mask_ref: (lc, F_pad)           f32   0 where (t, bank) valid, -1e30 otherwise
    bias_ref: (1, F_pad)            f32
    wp_ref:   (F_pad, out_pad)      bf16  projection weight (transposed, padded)
    bp_ref:   (1, out_pad)          f32
    out_ref:  (bt, out_pad)         f32   written only at the last time chunk
    max_ref:  (bt, F_pad)           f32   VMEM scratch, running max across chunks
    """
    c = pl.program_id(1)
    rows = lc * bt
    f_pad = w_ref.shape[2]

    # Conv for this time chunk: tap j is a sublane-aligned shifted slice of the
    # single slab (no k_max-way input duplication).  bf16 MXU, f32 accumulation.
    acc = jnp.dot(x_ref[pl.ds(0, rows), :], w_ref[0],
                  preferred_element_type=jnp.float32)
    for j in range(1, k_max):                         # static, unrolled taps
        acc = acc + jnp.dot(x_ref[pl.ds(j * bt, rows), :], w_ref[j],
                            preferred_element_type=jnp.float32)

    # Additive validity mask (f32, per time step / filter), then max over the
    # chunk's time axis.  bt % 8 == 0 so the reshape does not cross an (8,128)
    # tile boundary; the reduce over the leading axis is slab-wise VALU maxes.
    acc3 = acc.reshape(lc, bt, f_pad)
    mask3 = jnp.broadcast_to(mask_ref[...].reshape(lc, 1, f_pad),
                             (lc, bt, f_pad))
    pooled = jnp.max(acc3 + mask3, axis=0)            # (bt, F_pad)

    # Running max across time chunks in VMEM scratch.
    @pl.when(c == 0)
    def _():
        max_ref[...] = jnp.full_like(max_ref, -1e30)

    max_ref[...] = jnp.maximum(max_ref[...], pooled)

    # Finalize once per batch tile.  tanh is monotone, so bias+tanh commute with
    # the max; projection is one lane-dense bf16 matmul + one unmasked store.
    @pl.when(c == pl.num_programs(1) - 1)
    def _():
        feat = jnp.tanh(max_ref[...] + bias_ref[...])
        out_ref[...] = (jnp.dot(feat.astype(wp_ref.dtype), wp_ref[...],
                                preferred_element_type=jnp.float32)
                        + bp_ref[...])


def prepare_cnn_encoder_params(conv_ws, conv_bs, wp, bp, ngram_sizes, seq_len,
                               compute_dtype=jnp.bfloat16):
    """One-time parameter re-layout (module init time, NOT per forward call)."""
    k_sizes = tuple(int(k) for k in ngram_sizes)
    k_max, k_min = max(k_sizes), min(k_sizes)
    assert seq_len - k_max + 1 >= 1, "an ngram filter size exceeds seq_len"
    num_filter, d, _ = conv_ws[0].shape
    f_total = num_filter * len(k_sizes)
    f_pad = _round_up(f_total, 128)                  # lane-dense filter axis
    l_out_real = seq_len - k_min + 1

    # Fused conv weight: bank i occupies columns [i*F, (i+1)*F); taps j >= k_i
    # and padded filter columns are zero.  PyTorch (F, D, k) -> (k, D, F).
    w_fused = jnp.zeros((k_max, d, f_pad), jnp.float32)
    for i, (k, w) in enumerate(zip(k_sizes, conv_ws)):
        w_fused = w_fused.at[:k, :, i * num_filter:(i + 1) * num_filter].set(
            jnp.transpose(w.astype(jnp.float32), (2, 1, 0)))
    w_fused = w_fused.astype(compute_dtype)

    bias = jnp.zeros((1, f_pad), jnp.float32)
    for i, b in enumerate(conv_bs):
        bias = bias.at[0, i * num_filter:(i + 1) * num_filter].set(
            b.astype(jnp.float32))

    # Per-filter valid time length (padded filter columns use the max length so
    # they pool a plain zero -> tanh(0)=0 -> zero projection contribution).
    valid_len = jnp.full((f_pad,), l_out_real, jnp.int32)
    for i, k in enumerate(k_sizes):
        valid_len = valid_len.at[i * num_filter:(i + 1) * num_filter].set(
            seq_len - k + 1)

    # Projection (identity fallback when the module has projection_layer=None).
    if wp is None:
        out_dim = f_total
        wp_f32 = jnp.eye(f_total, dtype=jnp.float32)
        bp_f32 = jnp.zeros((f_total,), jnp.float32)
    else:
        out_dim = int(wp.shape[0])
        wp_f32 = wp.astype(jnp.float32)
        bp_f32 = bp.astype(jnp.float32)
    out_pad = _round_up(out_dim, 128)                # lane-dense output store
    wp_pad = jnp.zeros((f_pad, out_pad), jnp.float32)
    wp_pad = wp_pad.at[:f_total, :out_dim].set(wp_f32.T).astype(compute_dtype)
    bp_pad = jnp.zeros((1, out_pad), jnp.float32)
    bp_pad = bp_pad.at[0, :out_dim].set(bp_f32)

    return dict(k_max=k_max, d=d, seq_len=seq_len, l_out_real=l_out_real,
                f_total=f_total, f_pad=f_pad, out_dim=out_dim, out_pad=out_pad,
                compute_dtype=compute_dtype,
                w_fused=w_fused, bias=bias, valid_len=valid_len,
                wp=wp_pad, bp=bp_pad)


def cnn_encoder_forward(x, params, batch_tile=None, time_chunk=None):
    """x: (B, embedding_dim, seq_len) f32  ->  (B, output_dim) f32."""
    B, d, L = x.shape
    assert d == params['d'] and L == params['seq_len']
    k_max = params['k_max']
    f_pad, out_pad, out_dim = params['f_pad'], params['out_pad'], params['out_dim']
    l_out_real = params['l_out_real']
    cdt = params['compute_dtype']

    bt, lc = _choose_tiles(B, d, f_pad, out_pad, l_out_real, k_max,
                           batch_tile, time_chunk)
    b_pad = _round_up(max(B, bt), bt)
    n_bt = b_pad // bt
    l_out_pad = _round_up(_round_up(l_out_real, 8), lc)
    n_tc = l_out_pad // lc
    halo = lc + k_max - 1
    l_time = l_out_pad + k_max - 1

    # Cast to the MXU compute dtype BEFORE the relayout (halves relayout bytes).
    x_p = jnp.zeros((b_pad, d, l_time), cdt)
    x_p = x_p.at[:B, :, :L].set(x.astype(cdt))

    # One shifted slab per (batch tile, time chunk): rows ordered t_local*bt + b.
    # Chunks overlap only by the (k_max-1) halo; there is NO k_max-way copy.
    xc = jnp.stack([x_p[:, :, c * lc:c * lc + halo] for c in range(n_tc)], axis=0)
    xc = xc.reshape(n_tc, n_bt, bt, d, halo)
    xc = jnp.transpose(xc, (1, 0, 4, 2, 3))          # (n_bt, n_tc, halo, bt, d)
    x_slab = xc.reshape(n_bt, n_tc, halo * bt, d)

    # (time, filter) validity mask -- compact (l_out_pad, F_pad) f32, constant-
    # folded under jit (depends only on static shapes / params).
    t_idx = jnp.arange(l_out_pad, dtype=jnp.int32)[:, None]
    mask_tf = jnp.where(t_idx < params['valid_len'][None, :],
                        0.0, -1e30).astype(jnp.float32)

    est = _vmem_estimate(bt, lc, d, f_pad, out_pad, k_max)
    vmem_limit = int(min(max(2 * est, 16 << 20), 64 << 20))

    out_padded = pl.pallas_call(
        functools.partial(_textcnn_kernel, bt, lc, k_max),
        out_shape=jax.ShapeDtypeStruct((b_pad, out_pad), jnp.float32),
        grid=(n_bt, n_tc),
        in_specs=[
            pl.BlockSpec((None, None, halo * bt, d), lambda i, c: (i, c, 0, 0)),
            pl.BlockSpec((k_max, d, f_pad), lambda i, c: (0, 0, 0)),
            pl.BlockSpec((lc, f_pad), lambda i, c: (c, 0)),
            pl.BlockSpec((1, f_pad), lambda i, c: (0, 0)),
            pl.BlockSpec((f_pad, out_pad), lambda i, c: (0, 0)),
            pl.BlockSpec((1, out_pad), lambda i, c: (0, 0)),
        ],
        out_specs=pl.BlockSpec((bt, out_pad), lambda i, c: (i, 0)),
        scratch_shapes=[pltpu.VMEM((bt, f_pad), jnp.float32)],
        compiler_params=pltpu.CompilerParams(
            dimension_semantics=("parallel", "arbitrary"),
            vmem_limit_bytes=vmem_limit),
    )(x_slab, params['w_fused'], mask_tf, params['bias'],
      params['wp'], params['bp'])

    return out_padded[:B, :out_dim]


def reference_forward(x, conv_ws, conv_bs, wp, bp):
    """Plain-JAX f32 reference (same math) for correctness check."""
    feats = []
    for w, bb in zip(conv_ws, conv_bs):
        k = w.shape[-1]
        L_out = x.shape[-1] - k + 1
        conv = jnp.stack(
            [jnp.einsum('fdk,bdk->bf', w, x[:, :, t:t + k]) for t in range(L_out)],
            axis=-1) + bb[None, :, None]
        feats.append(jnp.max(jnp.tanh(conv), axis=-1))
    feat = jnp.concatenate(feats, axis=-1)
    return feat @ wp.T + bp


if __name__ == "__main__":
    B = 2
    embedding_dim = 32     # Conv1d in_channels
    seq_len = 16
    num_filter = 8
    ngram_sizes = (2, 3, 4, 5)
    f_total = num_filter * len(ngram_sizes)
    output_dim = 16

    key = jax.random.PRNGKey(0)
    keys = jax.random.split(key, 2 + 2 * len(ngram_sizes) + 2)

    x = jax.random.normal(keys[0], (B, embedding_dim, seq_len), dtype=jnp.float32)

    conv_ws, conv_bs = [], []
    for i, k in enumerate(ngram_sizes):
        bound = 1.0 / (embedding_dim * k) ** 0.5   # PyTorch Conv1d default init bound
        conv_ws.append(jax.random.uniform(
            keys[1 + 2 * i], (num_filter, embedding_dim, k),
            minval=-bound, maxval=bound, dtype=jnp.float32))
        conv_bs.append(jax.random.uniform(
            keys[2 + 2 * i], (num_filter,),
            minval=-bound, maxval=bound, dtype=jnp.float32))

    pbound = 1.0 / f_total ** 0.5                   # PyTorch Linear default init bound
    wp = jax.random.uniform(keys[-2], (output_dim, f_total),
                            minval=-pbound, maxval=pbound, dtype=jnp.float32)
    bp = jax.random.uniform(keys[-1], (output_dim,),
                            minval=-pbound, maxval=pbound, dtype=jnp.float32)

    # One-time parameter re-layout (module init), then a cached-jit forward.
    params = prepare_cnn_encoder_params(conv_ws, conv_bs, wp, bp, ngram_sizes,
                                        seq_len)
    fwd = jax.jit(lambda xx: cnn_encoder_forward(xx, params))

    out = jax.block_until_ready(fwd(x))

    ref = reference_forward(x, conv_ws, conv_bs, wp, bp)
    assert out.shape == (B, output_dim), out.shape
    # bf16 MXU operands with f32 accumulation -> loosened tolerance vs f32 ref.
    assert jnp.allclose(out, ref, rtol=2e-2, atol=2e-2), (out, ref)

    print("KERNEL_OK")
</pallas_src>

<mosaic_0001>
module attributes {stable_mosaic.version = 11 : i64} {
  func.func @_textcnn_kernel(%arg0: i32, %arg1: i32, %arg2: memref<1x1x160x32xbf16, #tpu.memory_space<vmem>>, %arg3: memref<5x32x128xbf16, #tpu.memory_space<vmem>>, %arg4: memref<16x128xf32, #tpu.memory_space<vmem>>, %arg5: memref<1x128xf32, #tpu.memory_space<vmem>>, %arg6: memref<128x128xbf16, #tpu.memory_space<vmem>>, %arg7: memref<1x128xf32, #tpu.memory_space<vmem>>, %arg8: memref<8x128xf32, #tpu.memory_space<vmem>>, %arg9: memref<8x128xf32, #tpu.memory_space<vmem>>) attributes {dimension_semantics = [#tpu.dimension_semantics<parallel>, #tpu.dimension_semantics<arbitrary>], iteration_bounds = array<i64: 1, 1>, scalar_prefetch = 0 : i64, scratch_operands = 1 : i64, tpu.core_type = #tpu.core_type<tc>, window_params = [{transform_indices = @transform_0, window_bounds = array<i64: 1, 1, 160, 32>}, {pipeline_mode = #tpu.pipeline_mode<synchronous>, transform_indices = @transform_1, window_bounds = array<i64: 5, 32, 128>}, {transform_indices = @transform_2, window_bounds = array<i64: 16, 128>}, {pipeline_mode = #tpu.pipeline_mode<synchronous>, transform_indices = @transform_3, window_bounds = array<i64: 1, 128>}, {pipeline_mode = #tpu.pipeline_mode<synchronous>, transform_indices = @transform_4, window_bounds = array<i64: 128, 128>}, {pipeline_mode = #tpu.pipeline_mode<synchronous>, transform_indices = @transform_5, window_bounds = array<i64: 1, 128>}, {transform_indices = @transform_6, window_bounds = array<i64: 8, 128>}]} {
    %c0 = arith.constant 0 : index
    %c0_0 = arith.constant 0 : index
    %c0_1 = arith.constant 0 : index
    %c0_2 = arith.constant 0 : index
    %0 = vector.load %arg2[%c0, %c0_0, %c0_1, %c0_2] : memref<1x1x160x32xbf16, #tpu.memory_space<vmem>>, vector<1x1x128x32xbf16>
    %1 = vector.shape_cast %0 : vector<1x1x128x32xbf16> to vector<128x32xbf16>
    %c0_3 = arith.constant 0 : index
    %c0_4 = arith.constant 0 : index
    %c0_5 = arith.constant 0 : index
    %2 = vector.load %arg3[%c0_3, %c0_4, %c0_5] : memref<5x32x128xbf16, #tpu.memory_space<vmem>>, vector<1x32x128xbf16>
    %3 = vector.shape_cast %2 : vector<1x32x128xbf16> to vector<32x128xbf16>
    %cst = arith.constant dense<0.000000e+00> : vector<128x128xf32>
    %4 = tpu.matmul %1, %3, %cst {dimension_numbers = #tpu.dot_dimension_numbers<[1], [0], [0], [1], [0, 0, 1, 1], [], []>} : vector<128x32xbf16>, vector<32x128xbf16>, vector<128x128xf32> -> vector<128x128xf32>
    %c0_6 = arith.constant 0 : index
    %c0_7 = arith.constant 0 : index
    %c8 = arith.constant 8 : index
    %c0_8 = arith.constant 0 : index
    %5 = vector.load %arg2[%c0_6, %c0_7, %c8, %c0_8] : memref<1x1x160x32xbf16, #tpu.memory_space<vmem>>, vector<1x1x128x32xbf16>
    %6 = vector.shape_cast %5 : vector<1x1x128x32xbf16> to vector<128x32xbf16>
    %c1 = arith.constant 1 : index
    %c0_9 = arith.constant 0 : index
    %c0_10 = arith.constant 0 : index
    %7 = vector.load %arg3[%c1, %c0_9, %c0_10] : memref<5x32x128xbf16, #tpu.memory_space<vmem>>, vector<1x32x128xbf16>
    %8 = vector.shape_cast %7 : vector<1x32x128xbf16> to vector<32x128xbf16>
    %cst_11 = arith.constant dense<0.000000e+00> : vector<128x128xf32>
    %9 = tpu.matmul %6, %8, %cst_11 {dimension_numbers = #tpu.dot_dimension_numbers<[1], [0], [0], [1], [0, 0, 1, 1], [], []>} : vector<128x32xbf16>, vector<32x128xbf16>, vector<128x128xf32> -> vector<128x128xf32>
    %10 = arith.addf %4, %9 : vector<128x128xf32>
    %c0_12 = arith.constant 0 : index
    %c0_13 = arith.constant 0 : index
    %c16 = arith.constant 16 : index
    %c0_14 = arith.constant 0 : index
    %11 = vector.load %arg2[%c0_12, %c0_13, %c16, %c0_14] : memref<1x1x160x32xbf16, #tpu.memory_space<vmem>>, vector<1x1x128x32xbf16>
    %12 = vector.shape_cast %11 : vector<1x1x128x32xbf16> to vector<128x32xbf16>
    %c2 = arith.constant 2 : index
    %c0_15 = arith.constant 0 : index
    %c0_16 = arith.constant 0 : index
    %13 = vector.load %arg3[%c2, %c0_15, %c0_16] : memref<5x32x128xbf16, #tpu.memory_space<vmem>>, vector<1x32x128xbf16>
    %14 = vector.shape_cast %13 : vector<1x32x128xbf16> to vector<32x128xbf16>
    %cst_17 = arith.constant dense<0.000000e+00> : vector<128x128xf32>
    %15 = tpu.matmul %12, %14, %cst_17 {dimension_numbers = #tpu.dot_dimension_numbers<[1], [0], [0], [1], [0, 0, 1, 1], [], []>} : vector<128x32xbf16>, vector<32x128xbf16>, vector<128x128xf32> -> vector<128x128xf32>
    %16 = arith.addf %10, %15 : vector<128x128xf32>
    %c0_18 = arith.constant 0 : index
    %c0_19 = arith.constant 0 : index
    %c24 = arith.constant 24 : index
    %c0_20 = arith.constant 0 : index
    %17 = vector.load %arg2[%c0_18, %c0_19, %c24, %c0_20] : memref<1x1x160x32xbf16, #tpu.memory_space<vmem>>, vector<1x1x128x32xbf16>
    %18 = vector.shape_cast %17 : vector<1x1x128x32xbf16> to vector<128x32xbf16>
    %c3 = arith.constant 3 : index
    %c0_21 = arith.constant 0 : index
    %c0_22 = arith.constant 0 : index
    %19 = vector.load %arg3[%c3, %c0_21, %c0_22] : memref<5x32x128xbf16, #tpu.memory_space<vmem>>, vector<1x32x128xbf16>
    %20 = vector.shape_cast %19 : vector<1x32x128xbf16> to vector<32x128xbf16>
    %cst_23 = arith.constant dense<0.000000e+00> : vector<128x128xf32>
    %21 = tpu.matmul %18, %20, %cst_23 {dimension_numbers = #tpu.dot_dimension_numbers<[1], [0], [0], [1], [0, 0, 1, 1], [], []>} : vector<128x32xbf16>, vector<32x128xbf16>, vector<128x128xf32> -> vector<128x128xf32>
    %22 = arith.addf %16, %21 : vector<128x128xf32>
    %c0_24 = arith.constant 0 : index
    %c0_25 = arith.constant 0 : index
    %c32 = arith.constant 32 : index
    %c0_26 = arith.constant 0 : index
    %23 = vector.load %arg2[%c0_24, %c0_25, %c32, %c0_26] : memref<1x1x160x32xbf16, #tpu.memory_space<vmem>>, vector<1x1x128x32xbf16>
    %24 = vector.shape_cast %23 : vector<1x1x128x32xbf16> to vector<128x32xbf16>
    %c4 = arith.constant 4 : index
    %c0_27 = arith.constant 0 : index
    %c0_28 = arith.constant 0 : index
    %25 = vector.load %arg3[%c4, %c0_27, %c0_28] : memref<5x32x128xbf16, #tpu.memory_space<vmem>>, vector<1x32x128xbf16>
    %26 = vector.shape_cast %25 : vector<1x32x128xbf16> to vector<32x128xbf16>
    %cst_29 = arith.constant dense<0.000000e+00> : vector<128x128xf32>
    %27 = tpu.matmul %24, %26, %cst_29 {dimension_numbers = #tpu.dot_dimension_numbers<[1], [0], [0], [1], [0, 0, 1, 1], [], []>} : vector<128x32xbf16>, vector<32x128xbf16>, vector<128x128xf32> -> vector<128x128xf32>
    %28 = arith.addf %22, %27 : vector<128x128xf32>
    %29 = vector.shape_cast %28 : vector<128x128xf32> to vector<16x8x128xf32>
    %c0_30 = arith.constant 0 : index
    %c0_31 = arith.constant 0 : index
    %30 = vector.load %arg4[%c0_30, %c0_31] : memref<16x128xf32, #tpu.memory_space<vmem>>, vector<16x128xf32>
    %31 = vector.shape_cast %30 : vector<16x128xf32> to vector<16x1x128xf32>
    %32 = vector.shape_cast %31 : vector<16x1x128xf32> to vector<16x1x128xf32>
    %33 = vector.broadcast %32 : vector<16x1x128xf32> to vector<16x8x128xf32>
    %34 = arith.addf %29, %33 : vector<16x8x128xf32>
    %cst_32 = arith.constant dense<0xFF800000> : vector<8x128xf32>
    %35 = vector.multi_reduction <maximumf>, %34, %cst_32 [0] : vector<16x8x128xf32> to vector<8x128xf32>
    %c0_i32 = arith.constant 0 : i32
    %36 = arith.cmpi eq, %arg1, %c0_i32 : i32
    %37 = arith.extui %36 : i1 to i32
    %c0_i32_33 = arith.constant 0 : i32
    %38 = arith.cmpi ne, %37, %c0_i32_33 : i32
    scf.if %38 {
      %cst_40 = arith.constant -1.000000e+30 : f32
      %45 = vector.broadcast %cst_40 : f32 to vector<8x128xf32>
      %c0_41 = arith.constant 0 : index
      %c0_42 = arith.constant 0 : index
      %46 = vector.load %arg9[%c0_41, %c0_42] : memref<8x128xf32, #tpu.memory_space<vmem>>, vector<8x128xf32>
      tpu.vector_store %arg9[%c0_41, %c0_42], %45 {strides = array<i32>} : memref<8x128xf32, #tpu.memory_space<vmem>>, vector<8x128xf32>,
    } else {
    }
    %c0_34 = arith.constant 0 : index
    %c0_35 = arith.constant 0 : index
    %39 = vector.load %arg9[%c0_34, %c0_35] : memref<8x128xf32, #tpu.memory_space<vmem>>, vector<8x128xf32>
    %40 = arith.maximumf %39, %35 : vector<8x128xf32>
    %c0_36 = arith.constant 0 : index
    %c0_37 = arith.constant 0 : index
    %41 = vector.load %arg9[%c0_36, %c0_37] : memref<8x128xf32, #tpu.memory_space<vmem>>, vector<8x128xf32>
    tpu.vector_store %arg9[%c0_36, %c0_37], %40 {strides = array<i32>} : memref<8x128xf32, #tpu.memory_space<vmem>>, vector<8x128xf32>,
    %c0_i32_38 = arith.constant 0 : i32
    %42 = arith.cmpi eq, %arg1, %c0_i32_38 : i32
    %43 = arith.extui %42 : i1 to i32
    %c0_i32_39 = arith.constant 0 : i32
    %44 = arith.cmpi ne, %43, %c0_i32_39 : i32
    scf.if %44 {
      %c0_40 = arith.constant 0 : index
      %c0_41 = arith.constant 0 : index
      %45 = vector.load %arg9[%c0_40, %c0_41] : memref<8x128xf32, #tpu.memory_space<vmem>>, vector<8x128xf32>
      %c0_42 = arith.constant 0 : index
      %c0_43 = arith.constant 0 : index
      %46 = vector.load %arg5[%c0_42, %c0_43] : memref<1x128xf32, #tpu.memory_space<vmem>>, vector<1x128xf32>
      %47 = vector.broadcast %46 : vector<1x128xf32> to vector<8x128xf32>
      %48 = arith.addf %45, %47 : vector<8x128xf32>
      %49 = math.tanh %48 : vector<8x128xf32>
      %50 = arith.truncf %49 : vector<8x128xf32> to vector<8x128xbf16>
      %c0_44 = arith.constant 0 : index
      %c0_45 = arith.constant 0 : index
      %51 = vector.load %arg6[%c0_44, %c0_45] : memref<128x128xbf16, #tpu.memory_space<vmem>>, vector<128x128xbf16>
      %cst_46 = arith.constant dense<0.000000e+00> : vector<8x128xf32>
      %52 = tpu.matmul %50, %51, %cst_46 {dimension_numbers = #tpu.dot_dimension_numbers<[1], [0], [0], [1], [0, 0, 1, 1], [], []>} : vector<8x128xbf16>, vector<128x128xbf16>, vector<8x128xf32> -> vector<8x128xf32>
      %c0_47 = arith.constant 0 : index
      %c0_48 = arith.constant 0 : index
      %53 = vector.load %arg7[%c0_47, %c0_48] : memref<1x128xf32, #tpu.memory_space<vmem>>, vector<1x128xf32>
      %54 = vector.broadcast %53 : vector<1x128xf32> to vector<8x128xf32>
      %55 = arith.addf %52, %54 : vector<8x128xf32>
      %c0_49 = arith.constant 0 : index
      %c0_50 = arith.constant 0 : index
      %56 = vector.load %arg8[%c0_49, %c0_50] : memref<8x128xf32, #tpu.memory_space<vmem>>, vector<8x128xf32>
      tpu.vector_store %arg8[%c0_49, %c0_50], %55 {strides = array<i32>} : memref<8x128xf32, #tpu.memory_space<vmem>>, vector<8x128xf32>,
    } else {
    }
    return
  }
  func.func @transform_0(%arg0: i32, %arg1: i32) -> (i32, i32, i32, i32) {
    %c0_i32 = arith.constant 0 : i32
    %c0_i32_0 = arith.constant 0 : i32
    %c0_i32_1 = arith.constant 0 : i32
    return %arg0, %arg1, %c0_i32, %c0_i32_0 : i32, i32, i32, i32
  }
  func.func @transform_1(%arg0: i32, %arg1: i32) -> (i32, i32, i32) {
    %c0_i32 = arith.constant 0 : i32
    %c0_i32_0 = arith.constant 0 : i32
    %c0_i32_1 = arith.constant 0 : i32
    %c0_i32_2 = arith.constant 0 : i32
    return %c0_i32, %c0_i32_0, %c0_i32_1 : i32, i32, i32
  }
  func.func @transform_2(%arg0: i32, %arg1: i32) -> (i32, i32) {
    %c0_i32 = arith.constant 0 : i32
    %c0_i32_0 = arith.constant 0 : i32
    return %arg1, %c0_i32 : i32, i32
  }
  func.func @transform_3(%arg0: i32, %arg1: i32) -> (i32, i32) {
    %c0_i32 = arith.constant 0 : i32
    %c0_i32_0 = arith.constant 0 : i32
    %c0_i32_1 = arith.constant 0 : i32
    return %c0_i32, %c0_i32_0 : i32, i32
  }
  func.func @transform_4(%arg0: i32, %arg1: i32) -> (i32, i32) {
    %c0_i32 = arith.constant 0 : i32
    %c0_i32_0 = arith.constant 0 : i32
    %c0_i32_1 = arith.constant 0 : i32
    return %c0_i32, %c0_i32_0 : i32, i32
  }
  func.func @transform_5(%arg0: i32, %arg1: i32) -> (i32, i32) {
    %c0_i32 = arith.constant 0 : i32
    %c0_i32_0 = arith.constant 0 : i32
    %c0_i32_1 = arith.constant 0 : i32
    return %c0_i32, %c0_i32_0 : i32, i32
  }
  func.func @transform_6(%arg0: i32, %arg1: i32) -> (i32, i32) {
    %c0_i32 = arith.constant 0 : i32
    %c0_i32_0 = arith.constant 0 : i32
    return %arg0, %c0_i32 : i32, i32
  }
}

</mosaic_0001>

<llo_original>
// kernel: _lambda_.1
$region0: #{_lambda_.1}
  #allocation0 [shape = 'u32[]', space=smem, size = 0x4, offset = 0x4, fixed_abs, tag = 'smem constant byte address 0x4 - core index']
  #allocation1 [shape = 'u32[144,128]{1,0:T(1,128)}', space=vmem, size = 0x12000, scoped, tag = 'internal scratch']
  #allocation2 [shape = 'f32[8,128]{1,0:T(8,128)}', space=vmem, size = 0x1000, scoped, tag = 'scratch operand']
  %s0 = inlined_call_operand.vmem [shape: bf16[1,1,160,32], index: 0, kind: input, shape index: {}]
  %s1 = inlined_call_operand.vmem [shape: bf16[5,32,128], index: 1, kind: input, shape index: {}]
  %s2 = inlined_call_operand.vmem [shape: f32[16,128], index: 2, kind: input, shape index: {}]
  %s3 = inlined_call_operand.vmem [shape: f32[1,128], index: 3, kind: input, shape index: {}]
  %s4 = inlined_call_operand.vmem [shape: bf16[128,128], index: 4, kind: input, shape index: {}]
  %s5 = inlined_call_operand.vmem [shape: f32[1,128], index: 5, kind: input, shape index: {}]
  %s6 = inlined_call_operand.vmem [shape: f32[8,128], index: 6, kind: output, shape index: {}]
  %s7 = sld [smem:[#allocation0]]
  $region42: #{_lambda_.1} parent=0
    _
  %s9 = ssub.s32 1, %s7
  %s10 = scalar_select 0, %s9, %s7
  // Predicated region
  $region2: #{_lambda_.1} parent=0 // pred_check
    _
  $region3: #{_lambda_.1} parent=0 // pred_check_branch
    %12 = sbr.rel (0) target = $region5
  $region4: #{_lambda_.1} parent=0 // pred_region
    _
  $region5: #{_lambda_.1} parent=0 // pred_fallthru
    _
  // Predicated region
  $region6: #{_lambda_.1} parent=0 // pred_check
    _
  $region7: #{_lambda_.1} parent=0 // pred_check_branch
    %14 = sbr.rel (0) target = $region9
  $region8: #{_lambda_.1} parent=0 // pred_region
    _
  $region9: #{_lambda_.1} parent=0 // pred_fallthru
    _
  // Predicated region
  $region10: #{_lambda_.1} parent=0 // pred_check
    _
  $region11: #{_lambda_.1} parent=0 // pred_check_branch
    %16 = sbr.rel (0) target = $region13
  $region12: #{_lambda_.1} parent=0 // pred_region
    _
  $region13: #{_lambda_.1} parent=0 // pred_fallthru
    _
  // Predicated region
  $region14: #{_lambda_.1} parent=0 // pred_check
    _
  $region15: #{_lambda_.1} parent=0 // pred_check_branch
    %18 = sbr.rel (0) target = $region17
  $region16: #{_lambda_.1} parent=0 // pred_region
    _
  $region17: #{_lambda_.1} parent=0 // pred_fallthru
    _
  // Predicated region
  $region18: #{_lambda_.1} parent=0 // pred_check
    _
  $region19: #{_lambda_.1} parent=0 // pred_check_branch
    %20 = sbr.rel (0) target = $region21
  $region20: #{_lambda_.1} parent=0 // pred_region
    _
  $region21: #{_lambda_.1} parent=0 // pred_fallthru
    _
  // Predicated region
  $region22: #{_lambda_.1} parent=0 // pred_check
    _
  $region23: #{_lambda_.1} parent=0 // pred_check_branch
    %22 = sbr.rel (0) target = $region25
  $region24: #{_lambda_.1} parent=0 // pred_region
    _
  $region25: #{_lambda_.1} parent=0 // pred_fallthru
    _
  %v24 = vld [vmem:[%s0] sm:$0xf]
  %v25 = vld [vmem:[%s0 + $0x4] sm:$0xf]
  %v26 = vld [vmem:[%s0 + $0x8] sm:$0xf]
  %v27 = vld [vmem:[%s0 + $0xc] sm:$0xf]
  %v28 = vld [vmem:[%s0 + $0x10] sm:$0xf]
  %v29 = vld [vmem:[%s0 + $0x14] sm:$0xf]
  %v30 = vld [vmem:[%s0 + $0x18] sm:$0xf]
  %v31 = vld [vmem:[%s0 + $0x1c] sm:$0xf]
  %v32 = vld [vmem:[%s0 + $0x20] sm:$0xf]
  %v33 = vld [vmem:[%s0 + $0x24] sm:$0xf]
  %v34 = vld [vmem:[%s0 + $0x28] sm:$0xf]
  %v35 = vld [vmem:[%s0 + $0x2c] sm:$0xf]
  %v36 = vld [vmem:[%s0 + $0x30] sm:$0xf]
  %v37 = vld [vmem:[%s0 + $0x34] sm:$0xf]
  %v38 = vld [vmem:[%s0 + $0x38] sm:$0xf]
  %v39 = vld [vmem:[%s0 + $0x3c] sm:$0xf]
  %v40 = vld [vmem:[%s1] sm:$0xf]
  %v41 = vld [vmem:[%s1 + $0x4] sm:$0xf]
  %v42 = vld [vmem:[%s1 + $0x8] sm:$0xf]
  %v43 = vld [vmem:[%s1 + $0xc] sm:$0xf]
  %v44 = vld [vmem:[%s0 + $0x40] sm:$0xf]
  %s45 = scalar_lea.vmem %s1, 16
  %v46 = vld [vmem:[%s45] sm:$0xf]
  %v47 = vld [vmem:[%s45 + $0x4] sm:$0xf]
  %v48 = vld [vmem:[%s45 + $0x8] sm:$0xf]
  %v49 = vld [vmem:[%s45 + $0xc] sm:$0xf]
  %v66 = vunpack.c.l.b16 %v25
  %v67 = vunpack.c.l.b16 %v26
  %v68 = vunpack.c.l.b16 %v27
  %v69 = vunpack.c.l.b16 %v28
  %v70 = vunpack.c.l.b16 %v29
  %v71 = vunpack.c.l.b16 %v30
  %v72 = vunpack.c.l.b16 %v31
  %v73 = vunpack.c.l.b16 %v32
  %v74 = vunpack.c.l.b16 %v33
  %v75 = vunpack.c.l.b16 %v34
  %v76 = vunpack.c.l.b16 %v35
  %v77 = vunpack.c.l.b16 %v36
  %v78 = vunpack.c.l.b16 %v37
  %v79 = vunpack.c.l.b16 %v38
  %v80 = vunpack.c.l.b16 %v39
  %v81 = vunpack.c.l.b16 %v44
  %v82 = vpack.c.b16 %v67, %v66
  %v83 = vpack.c.b16 %v69, %v68
  %v84 = vpack.c.b16 %v71, %v70
  %v85 = vpack.c.b16 %v73, %v72
  %v86 = vpack.c.b16 %v75, %v74
  %v87 = vpack.c.b16 %v77, %v76
  %v88 = vpack.c.b16 %v79, %v78
  %v89 = vpack.c.b16 %v81, %v80
  %v94 = vunpack.c.l.b16 %v46
  %v95 = vunpack.c.l.b16 %v47
  %v96 = vunpack.c.l.b16 %v48
  %v97 = vunpack.c.l.b16 %v49
  %v98 = vpack.c.b16 %v95, %v94
  %v99 = vpack.c.b16 %v97, %v96
  %vm102 = vcmask 261120
  %v104 = vsel %vm102, %v82, 0
  %v107 = vsel %vm102, %v83, 0
  %v110 = vsel %vm102, %v84, 0
  %v113 = vsel %vm102, %v85, 0
  %v116 = vsel %vm102, %v86, 0
  %v119 = vsel %vm102, %v87, 0
  %v122 = vsel %vm102, %v88, 0
  %v125 = vsel %vm102, %v89, 0
  %127 = vmatprep.subr.bf16.mxu0 0
  %128 = vmatpush1.bf16.msra.mxu0 0
  %129 = vmatprep.subr.bf16.mxu0 0
  %130 = vmatpush1.bf16.msra.mxu0 0
  %131 = vmatprep.subr.bf16.mxu0 0
  %132 = vmatpush1.bf16.msra.mxu0 0
  %133 = vmatprep.subr.bf16.mxu0 0
  %134 = vmatpush1.bf16.msra.mxu0 0
  %135 = vmatprep.subr.bf16.mxu0 0
  %136 = vmatpush1.bf16.msra.mxu0 0
  %137 = vmatprep.subr.bf16.mxu0 0
  %138 = vmatpush1.bf16.msra.mxu0 0
  %139 = vmatprep.subr.bf16.mxu0 0
  %140 = vmatpush1.bf16.msra.mxu0 %v99
  %141 = vmatprep.subr.bf16.mxu0 0
  %142 = vmatpush1.bf16.msra.mxu0 %v98
  %143 = vmatprep.subr.bf16.mxu0 0
  %144 = vmatpush2.bf16.msra.mxu0 0
  %145 = vmatprep.subr.bf16.mxu0 0
  %146 = vmatpush2.bf16.msra.mxu0 0
  %147 = vmatprep.subr.bf16.mxu0 0
  %148 = vmatpush2.bf16.msra.mxu0 0
  %149 = vmatprep.subr.bf16.mxu0 0
  %150 = vmatpush2.bf16.msra.mxu0 0
  %151 = vmatprep.subr.bf16.mxu0 0
  %152 = vmatpush2.bf16.msra.mxu0 0
  %153 = vmatprep.subr.bf16.mxu0 0
  %154 = vmatpush2.bf16.msra.mxu0 0
  %155 = vmatprep.subr.bf16.mxu0 0
  %156 = vmatpush2.bf16.msra.mxu0 0
  %157 = vmatprep.subr.bf16.mxu0 0
  %158 = vmatpush2.bf16.msra.mxu0 0
  %159 = vmatprep.mubr.bf16.mxu0 0
  %160 = vmatmul.mubr.bf16.gmra.mxu0 %v104
  %v161 = vpop.f32.mrf.mxu0
  %v162 = vadd.f32 0.0, %v161
  %v163 = vpop.f32.mrf.mxu0
  %v164 = vpop.f32.mrf.mxu0
  %v165 = vadd.f32 0.0, %v164
  %v166 = vpop.f32.mrf.mxu0
  %167 = vmatprep.mubr.bf16.mxu0 0
  %168 = vmatmul.mubr.bf16.gmra.mxu0 %v107
  %v169 = vpop.f32.mrf.mxu0
  %v170 = vadd.f32 0.0, %v169
  %v171 = vpop.f32.mrf.mxu0
  %v172 = vpop.f32.mrf.mxu0
  %v173 = vadd.f32 0.0, %v172
  %v174 = vpop.f32.mrf.mxu0
  %175 = vmatprep.mubr.bf16.mxu0 0
  %176 = vmatmul.mubr.bf16.gmra.mxu0 %v110
  %v177 = vpop.f32.mrf.mxu0
  %v178 = vadd.f32 0.0, %v177
  %v179 = vpop.f32.mrf.mxu0
  %v180 = vpop.f32.mrf.mxu0
  %v181 = vadd.f32 0.0, %v180
  %v182 = vpop.f32.mrf.mxu0
  %183 = vmatprep.mubr.bf16.mxu0 0
  %184 = vmatmul.mubr.bf16.gmra.mxu0 %v113
  %v185 = vpop.f32.mrf.mxu0
  %v186 = vadd.f32 0.0, %v185
  %v187 = vpop.f32.mrf.mxu0
  %v188 = vpop.f32.mrf.mxu0
  %v189 = vadd.f32 0.0, %v188
  %v190 = vpop.f32.mrf.mxu0
  %191 = vmatprep.mubr.bf16.mxu0 0
  %192 = vmatmul.mubr.bf16.gmra.mxu0 %v116
  %v193 = vpop.f32.mrf.mxu0
  %v194 = vadd.f32 0.0, %v193
  %v195 = vpop.f32.mrf.mxu0
  %v196 = vpop.f32.mrf.mxu0
  %v197 = vadd.f32 0.0, %v196
  %v198 = vpop.f32.mrf.mxu0
  %199 = vmatprep.mubr.bf16.mxu0 0
  %200 = vmatmul.mubr.bf16.gmra.mxu0 %v119
  %v201 = vpop.f32.mrf.mxu0
  %v202 = vadd.f32 0.0, %v201
  %v203 = vpop.f32.mrf.mxu0
  %v204 = vpop.f32.mrf.mxu0
  %v205 = vadd.f32 0.0, %v204
  %v206 = vpop.f32.mrf.mxu0
  %207 = vmatprep.mubr.bf16.mxu0 0
  %208 = vmatmul.mubr.bf16.gmra.mxu0 %v122
  %v209 = vpop.f32.mrf.mxu0
  %v210 = vadd.f32 0.0, %v209
  %v211 = vpop.f32.mrf.mxu0
  %v212 = vpop.f32.mrf.mxu0
  %v213 = vadd.f32 0.0, %v212
  %v214 = vpop.f32.mrf.mxu0
  %215 = vmatprep.mubr.bf16.mxu0 0
  %216 = vmatmul.mubr.bf16.gmra.mxu0 %v125
  %v217 = vpop.f32.mrf.mxu0
  %v218 = vadd.f32 0.0, %v217
  %v219 = vpop.f32.mrf.mxu0
  %v220 = vpop.f32.mrf.mxu0
  %v221 = vadd.f32 0.0, %v220
  %v222 = vpop.f32.mrf.mxu0
  %223 = vdwg.mxu0
  %v225 = vunpack.c.l.b16 %v24
  %v226 = vpack.c.b16 %v66, %v225
  %v227 = vpack.c.b16 %v68, %v67
  %v228 = vpack.c.b16 %v70, %v69
  %v229 = vpack.c.b16 %v72, %v71
  %v230 = vpack.c.b16 %v74, %v73
  %v231 = vpack.c.b16 %v76, %v75
  %v232 = vpack.c.b16 %v78, %v77
  %v233 = vpack.c.b16 %v80, %v79
  %v238 = vunpack.c.l.b16 %v40
  %v239 = vunpack.c.l.b16 %v41
  %v240 = vunpack.c.l.b16 %v42
  %v241 = vunpack.c.l.b16 %v43
  %v242 = vpack.c.b16 %v239, %v238
  %v243 = vpack.c.b16 %v241, %v240
  %v247 = vsel %vm102, %v226, 0
  %v250 = vsel %vm102, %v227, 0
  %v253 = vsel %vm102, %v228, 0
  %v256 = vsel %vm102, %v229, 0
  %v259 = vsel %vm102, %v230, 0
  %v262 = vsel %vm102, %v231, 0
  %v265 = vsel %vm102, %v232, 0
  %v268 = vsel %vm102, %v233, 0
  %270 = vmatprep.subr.bf16.mxu0 0
  %271 = vmatpush1.bf16.msra.mxu0 0
  %272 = vmatprep.subr.bf16.mxu0 0
  %273 = vmatpush1.bf16.msra.mxu0 0
  %274 = vmatprep.subr.bf16.mxu0 0
  %275 = vmatpush1.bf16.msra.mxu0 0
  %276 = vmatprep.subr.bf16.mxu0 0
  %277 = vmatpush1.bf16.msra.mxu0 0
  %278 = vmatprep.subr.bf16.mxu0 0
  %279 = vmatpush1.bf16.msra.mxu0 0
  %280 = vmatprep.subr.bf16.mxu0 0
  %281 = vmatpush1.bf16.msra.mxu0 0
  %282 = vmatprep.subr.bf16.mxu0 0
  %283 = vmatpush1.bf16.msra.mxu0 %v243
  %284 = vmatprep.subr.bf16.mxu0 0
  %285 = vmatpush1.bf16.msra.mxu0 %v242
  %286 = vmatprep.subr.bf16.mxu0 0
  %287 = vmatpush2.bf16.msra.mxu0 0
  %288 = vmatprep.subr.bf16.mxu0 0
  %289 = vmatpush2.bf16.msra.mxu0 0
  %290 = vmatprep.subr.bf16.mxu0 0
  %291 = vmatpush2.bf16.msra.mxu0 0
  %292 = vmatprep.subr.bf16.mxu0 0
  %293 = vmatpush2.bf16.msra.mxu0 0
  %294 = vmatprep.subr.bf16.mxu0 0
  %295 = vmatpush2.bf16.msra.mxu0 0
  %296 = vmatprep.subr.bf16.mxu0 0
  %297 = vmatpush2.bf16.msra.mxu0 0
  %298 = vmatprep.subr.bf16.mxu0 0
  %299 = vmatpush2.bf16.msra.mxu0 0
  %300 = vmatprep.subr.bf16.mxu0 0
  %301 = vmatpush2.bf16.msra.mxu0 0
  %302 = vmatprep.mubr.bf16.mxu0 0
  %303 = vmatmul.mubr.bf16.gmra.mxu0 %v247
  %v304 = vpop.f32.mrf.mxu0
  %v305 = vadd.f32 %v162, %v304
  %v306 = vpop.f32.mrf.mxu0
  %v307 = vpop.f32.mrf.mxu0
  %v308 = vadd.f32 %v165, %v307
  %v309 = vpop.f32.mrf.mxu0
  %310 = vmatprep.mubr.bf16.mxu0 0
  %311 = vmatmul.mubr.bf16.gmra.mxu0 %v250
  %v312 = vpop.f32.mrf.mxu0
  %v313 = vadd.f32 %v170, %v312
  %v314 = vpop.f32.mrf.mxu0
  %v315 = vpop.f32.mrf.mxu0
  %v316 = vadd.f32 %v173, %v315
  %v317 = vpop.f32.mrf.mxu0
  %318 = vmatprep.mubr.bf16.mxu0 0
  %319 = vmatmul.mubr.bf16.gmra.mxu0 %v253
  %v320 = vpop.f32.mrf.mxu0
  %v321 = vadd.f32 %v178, %v320
  %v322 = vpop.f32.mrf.mxu0
  %v323 = vpop.f32.mrf.mxu0
  %v324 = vadd.f32 %v181, %v323
  %v325 = vpop.f32.mrf.mxu0
  %326 = vmatprep.mubr.bf16.mxu0 0
  %327 = vmatmul.mubr.bf16.gmra.mxu0 %v256
  %v328 = vpop.f32.mrf.mxu0
  %v329 = vadd.f32 %v186, %v328
  %v330 = vpop.f32.mrf.mxu0
  %v331 = vpop.f32.mrf.mxu0
  %v332 = vadd.f32 %v189, %v331
  %v333 = vpop.f32.mrf.mxu0
  %334 = vmatprep.mubr.bf16.mxu0 0
  %335 = vmatmul.mubr.bf16.gmra.mxu0 %v259
  %v336 = vpop.f32.mrf.mxu0
  %v337 = vadd.f32 %v194, %v336
  %v338 = vpop.f32.mrf.mxu0
  %v339 = vpop.f32.mrf.mxu0
  %v340 = vadd.f32 %v197, %v339
  %v341 = vpop.f32.mrf.mxu0
  %342 = vmatprep.mubr.bf16.mxu0 0
  %343 = vmatmul.mubr.bf16.gmra.mxu0 %v262
  %v344 = vpop.f32.mrf.mxu0
  %v345 = vadd.f32 %v202, %v344
  %v346 = vpop.f32.mrf.mxu0
  %v347 = vpop.f32.mrf.mxu0
  %v348 = vadd.f32 %v205, %v347
  %v349 = vpop.f32.mrf.mxu0
  %350 = vmatprep.mubr.bf16.mxu0 0
  %351 = vmatmul.mubr.bf16.gmra.mxu0 %v265
  %v352 = vpop.f32.mrf.mxu0
  %v353 = vadd.f32 %v210, %v352
  %v354 = vpop.f32.mrf.mxu0
  %v355 = vpop.f32.mrf.mxu0
  %v356 = vadd.f32 %v213, %v355
  %v357 = vpop.f32.mrf.mxu0
  %358 = vmatprep.mubr.bf16.mxu0 0
  %359 = vmatmul.mubr.bf16.gmra.mxu0 %v268
  %v360 = vpop.f32.mrf.mxu0
  %v361 = vadd.f32 %v218, %v360
  %v362 = vpop.f32.mrf.mxu0
  %v363 = vpop.f32.mrf.mxu0
  %v364 = vadd.f32 %v221, %v363
  %v365 = vpop.f32.mrf.mxu0
  %366 = vdwg.mxu0
  %v367 = vld [vmem:[%s0 + $0x8] sm:$0xf]
  %v368 = vld [vmem:[%s0 + $0xc] sm:$0xf]
  %v369 = vld [vmem:[%s0 + $0x10] sm:$0xf]
  %v370 = vld [vmem:[%s0 + $0x14] sm:$0xf]
  %v371 = vld [vmem:[%s0 + $0x18] sm:$0xf]
  %v372 = vld [vmem:[%s0 + $0x1c] sm:$0xf]
  %v373 = vld [vmem:[%s0 + $0x20] sm:$0xf]
  %v374 = vld [vmem:[%s0 + $0x24] sm:$0xf]
  %v375 = vld [vmem:[%s0 + $0x28] sm:$0xf]
  %v376 = vld [vmem:[%s0 + $0x2c] sm:$0xf]
  %v377 = vld [vmem:[%s0 + $0x30] sm:$0xf]
  %v378 = vld [vmem:[%s0 + $0x34] sm:$0xf]
  %v379 = vld [vmem:[%s0 + $0x38] sm:$0xf]
  %v380 = vld [vmem:[%s0 + $0x3c] sm:$0xf]
  %v381 = vld [vmem:[%s0 + $0x40] sm:$0xf]
  %v382 = vld [vmem:[%s0 + $0x44] sm:$0xf]
  %s383 = scalar_lea.vmem %s1, 32
  %v384 = vld [vmem:[%s383] sm:$0xf]
  %v385 = vld [vmem:[%s383 + $0x4] sm:$0xf]
  %v386 = vld [vmem:[%s383 + $0x8] sm:$0xf]
  %v387 = vld [vmem:[%s383 + $0xc] sm:$0xf]
  %v404 = vunpack.c.l.b16 %v367
  %v405 = vunpack.c.l.b16 %v368
  %v406 = vunpack.c.l.b16 %v369
  %v407 = vunpack.c.l.b16 %v370
  %v408 = vunpack.c.l.b16 %v371
  %v409 = vunpack.c.l.b16 %v372
  %v410 = vunpack.c.l.b16 %v373
  %v411 = vunpack.c.l.b16 %v374
  %v412 = vunpack.c.l.b16 %v375
  %v413 = vunpack.c.l.b16 %v376
  %v414 = vunpack.c.l.b16 %v377
  %v415 = vunpack.c.l.b16 %v378
  %v416 = vunpack.c.l.b16 %v379
  %v417 = vunpack.c.l.b16 %v380
  %v418 = vunpack.c.l.b16 %v381
  %v419 = vunpack.c.l.b16 %v382
  %v420 = vpack.c.b16 %v405, %v404
  %v421 = vpack.c.b16 %v407, %v406
  %v422 = vpack.c.b16 %v409, %v408
  %v423 = vpack.c.b16 %v411, %v410
  %v424 = vpack.c.b16 %v413, %v412
  %v425 = vpack.c.b16 %v415, %v414
  %v426 = vpack.c.b16 %v417, %v416
  %v427 = vpack.c.b16 %v419, %v418
  %v432 = vunpack.c.l.b16 %v384
  %v433 = vunpack.c.l.b16 %v385
  %v434 = vunpack.c.l.b16 %v386
  %v435 = vunpack.c.l.b16 %v387
  %v436 = vpack.c.b16 %v433, %v432
  %v437 = vpack.c.b16 %v435, %v434
  %v441 = vsel %vm102, %v420, 0
  %v444 = vsel %vm102, %v421, 0
  %v447 = vsel %vm102, %v422, 0
  %v450 = vsel %vm102, %v423, 0
  %v453 = vsel %vm102, %v424, 0
  %v456 = vsel %vm102, %v425, 0
  %v459 = vsel %vm102, %v426, 0
  %v462 = vsel %vm102, %v427, 0
  %464 = vmatprep.subr.bf16.mxu0 0
  %465 = vmatpush1.bf16.msra.mxu0 0
  %466 = vmatprep.subr.bf16.mxu0 0
  %467 = vmatpush1.bf16.msra.mxu0 0
  %468 = vmatprep.subr.bf16.mxu0 0
  %469 = vmatpush1.bf16.msra.mxu0 0
  %470 = vmatprep.subr.bf16.mxu0 0
  %471 = vmatpush1.bf16.msra.mxu0 0
  %472 = vmatprep.subr.bf16.mxu0 0
  %473 = vmatpush1.bf16.msra.mxu0 0
  %474 = vmatprep.subr.bf16.mxu0 0
  %475 = vmatpush1.bf16.msra.mxu0 0
  %476 = vmatprep.subr.bf16.mxu0 0
  %477 = vmatpush1.bf16.msra.mxu0 %v437
  %478 = vmatprep.subr.bf16.mxu0 0
  %479 = vmatpush1.bf16.msra.mxu0 %v436
  %480 = vmatprep.subr.bf16.mxu0 0
  %481 = vmatpush2.bf16.msra.mxu0 0
  %482 = vmatprep.subr.bf16.mxu0 0
  %483 = vmatpush2.bf16.msra.mxu0 0
  %484 = vmatprep.subr.bf16.mxu0 0
  %485 = vmatpush2.bf16.msra.mxu0 0
  %486 = vmatprep.subr.bf16.mxu0 0
  %487 = vmatpush2.bf16.msra.mxu0 0
  %488 = vmatprep.subr.bf16.mxu0 0
  %489 = vmatpush2.bf16.msra.mxu0 0
  %490 = vmatprep.subr.bf16.mxu0 0
  %491 = vmatpush2.bf16.msra.mxu0 0
  %492 = vmatprep.subr.bf16.mxu0 0
  %493 = vmatpush2.bf16.msra.mxu0 0
  %494 = vmatprep.subr.bf16.mxu0 0
  %495 = vmatpush2.bf16.msra.mxu0 0
  %496 = vmatprep.mubr.bf16.mxu0 0
  %497 = vmatmul.mubr.bf16.gmra.mxu0 %v441
  %v498 = vpop.f32.mrf.mxu0
  %v499 = vadd.f32 0.0, %v498
  %v500 = vpop.f32.mrf.mxu0
  %v501 = vpop.f32.mrf.mxu0
  %v502 = vadd.f32 0.0, %v501
  %v503 = vpop.f32.mrf.mxu0
  %504 = vmatprep.mubr.bf16.mxu0 0
  %505 = vmatmul.mubr.bf16.gmra.mxu0 %v444
  %v506 = vpop.f32.mrf.mxu0
  %v507 = vadd.f32 0.0, %v506
  %v508 = vpop.f32.mrf.mxu0
  %v509 = vpop.f32.mrf.mxu0
  %v510 = vadd.f32 0.0, %v509
  %v511 = vpop.f32.mrf.mxu0
  %512 = vmatprep.mubr.bf16.mxu0 0
  %513 = vmatmul.mubr.bf16.gmra.mxu0 %v447
  %v514 = vpop.f32.mrf.mxu0
  %v515 = vadd.f32 0.0, %v514
  %v516 = vpop.f32.mrf.mxu0
  %v517 = vpop.f32.mrf.mxu0
  %v518 = vadd.f32 0.0, %v517
  %v519 = vpop.f32.mrf.mxu0
  %520 = vmatprep.mubr.bf16.mxu0 0
  %521 = vmatmul.mubr.bf16.gmra.mxu0 %v450
  %v522 = vpop.f32.mrf.mxu0
  %v523 = vadd.f32 0.0, %v522
  %v524 = vpop.f32.mrf.mxu0
  %v525 = vpop.f32.mrf.mxu0
  %v526 = vadd.f32 0.0, %v525
  %v527 = vpop.f32.mrf.mxu0
  %528 = vmatprep.mubr.bf16.mxu0 0
  %529 = vmatmul.mubr.bf16.gmra.mxu0 %v453
  %v530 = vpop.f32.mrf.mxu0
  %v531 = vadd.f32 0.0, %v530
  %v532 = vpop.f32.mrf.mxu0
  %v533 = vpop.f32.mrf.mxu0
  %v534 = vadd.f32 0.0, %v533
  %v535 = vpop.f32.mrf.mxu0
  %536 = vmatprep.mubr.bf16.mxu0 0
  %537 = vmatmul.mubr.bf16.gmra.mxu0 %v456
  %v538 = vpop.f32.mrf.mxu0
  %v539 = vadd.f32 0.0, %v538
  %v540 = vpop.f32.mrf.mxu0
  %v541 = vpop.f32.mrf.mxu0
  %v542 = vadd.f32 0.0, %v541
  %v543 = vpop.f32.mrf.mxu0
  %544 = vmatprep.mubr.bf16.mxu0 0
  %545 = vmatmul.mubr.bf16.gmra.mxu0 %v459
  %v546 = vpop.f32.mrf.mxu0
  %v547 = vadd.f32 0.0, %v546
  %v548 = vpop.f32.mrf.mxu0
  %v549 = vpop.f32.mrf.mxu0
  %v550 = vadd.f32 0.0, %v549
  %v551 = vpop.f32.mrf.mxu0
  %552 = vmatprep.mubr.bf16.mxu0 0
  %553 = vmatmul.mubr.bf16.gmra.mxu0 %v462
  %v554 = vpop.f32.mrf.mxu0
  %v555 = vadd.f32 0.0, %v554
  %v556 = vpop.f32.mrf.mxu0
  %v557 = vpop.f32.mrf.mxu0
  %v558 = vadd.f32 0.0, %v557
  %v559 = vpop.f32.mrf.mxu0
  %560 = vdwg.mxu0
  %v561 = vadd.f32 %v305, %v499
  %v562 = vadd.f32 %v308, %v502
  %v563 = vadd.f32 %v313, %v507
  %v564 = vadd.f32 %v316, %v510
  %v565 = vadd.f32 %v321, %v515
  %v566 = vadd.f32 %v324, %v518
  %v567 = vadd.f32 %v329, %v523
  %v568 = vadd.f32 %v332, %v526
  %v569 = vadd.f32 %v337, %v531
  %v570 = vadd.f32 %v340, %v534
  %v571 = vadd.f32 %v345, %v539
  %v572 = vadd.f32 %v348, %v542
  %v573 = vadd.f32 %v353, %v547
  %v574 = vadd.f32 %v356, %v550
  %v575 = vadd.f32 %v361, %v555
  %v576 = vadd.f32 %v364, %v558
  %v577 = vld [vmem:[%s0 + $0xc] sm:$0xf]
  %v578 = vld [vmem:[%s0 + $0x10] sm:$0xf]
  %v579 = vld [vmem:[%s0 + $0x14] sm:$0xf]
  %v580 = vld [vmem:[%s0 + $0x18] sm:$0xf]
  %v581 = vld [vmem:[%s0 + $0x1c] sm:$0xf]
  %v582 = vld [vmem:[%s0 + $0x20] sm:$0xf]
  %v583 = vld [vmem:[%s0 + $0x24] sm:$0xf]
  %v584 = vld [vmem:[%s0 + $0x28] sm:$0xf]
  %v585 = vld [vmem:[%s0 + $0x2c] sm:$0xf]
  %v586 = vld [vmem:[%s0 + $0x30] sm:$0xf]
  %v587 = vld [vmem:[%s0 + $0x34] sm:$0xf]
  %v588 = vld [vmem:[%s0 + $0x38] sm:$0xf]
  %v589 = vld [vmem:[%s0 + $0x3c] sm:$0xf]
  %v590 = vld [vmem:[%s0 + $0x40] sm:$0xf]
  %v591 = vld [vmem:[%s0 + $0x44] sm:$0xf]
  %v592 = vld [vmem:[%s0 + $0x48] sm:$0xf]
  %s593 = scalar_lea.vmem %s1, 48
  %v594 = vld [vmem:[%s593] sm:$0xf]
  %v595 = vld [vmem:[%s593 + $0x4] sm:$0xf]
  %v596 = vld [vmem:[%s593 + $0x8] sm:$0xf]
  %v597 = vld [vmem:[%s593 + $0xc] sm:$0xf]
  %v614 = vunpack.c.l.b16 %v577
  %v615 = vunpack.c.l.b16 %v578
  %v616 = vunpack.c.l.b16 %v579
  %v617 = vunpack.c.l.b16 %v580
  %v618 = vunpack.c.l.b16 %v581
  %v619 = vunpack.c.l.b16 %v582
  %v620 = vunpack.c.l.b16 %v583
  %v621 = vunpack.c.l.b16 %v584
  %v622 = vunpack.c.l.b16 %v585
  %v623 = vunpack.c.l.b16 %v586
  %v624 = vunpack.c.l.b16 %v587
  %v625 = vunpack.c.l.b16 %v588
  %v626 = vunpack.c.l.b16 %v589
  %v627 = vunpack.c.l.b16 %v590
  %v628 = vunpack.c.l.b16 %v591
  %v629 = vunpack.c.l.b16 %v592
  %v630 = vpack.c.b16 %v615, %v614
  %v631 = vpack.c.b16 %v617, %v616
  %v632 = vpack.c.b16 %v619, %v618
  %v633 = vpack.c.b16 %v621, %v620
  %v634 = vpack.c.b16 %v623, %v622
  %v635 = vpack.c.b16 %v625, %v624
  %v636 = vpack.c.b16 %v627, %v626
  %v637 = vpack.c.b16 %v629, %v628
  %v642 = vunpack.c.l.b16 %v594
  %v643 = vunpack.c.l.b16 %v595
  %v644 = vunpack.c.l.b16 %v596
  %v645 = vunpack.c.l.b16 %v597
  %v646 = vpack.c.b16 %v643, %v642
  %v647 = vpack.c.b16 %v645, %v644
  %v651 = vsel %vm102, %v630, 0
  %v654 = vsel %vm102, %v631, 0
  %v657 = vsel %vm102, %v632, 0
  %v660 = vsel %vm102, %v633, 0
  %v663 = vsel %vm102, %v634, 0
  %v666 = vsel %vm102, %v635, 0
  %v669 = vsel %vm102, %v636, 0
  %v672 = vsel %vm102, %v637, 0
  %674 = vmatprep.subr.bf16.mxu0 0
  %675 = vmatpush1.bf16.msra.mxu0 0
  %676 = vmatprep.subr.bf16.mxu0 0
  %677 = vmatpush1.bf16.msra.mxu0 0
  %678 = vmatprep.subr.bf16.mxu0 0
  %679 = vmatpush1.bf16.msra.mxu0 0
  %680 = vmatprep.subr.bf16.mxu0 0
  %681 = vmatpush1.bf16.msra.mxu0 0
  %682 = vmatprep.subr.bf16.mxu0 0
  %683 = vmatpush1.bf16.msra.mxu0 0
  %684 = vmatprep.subr.bf16.mxu0 0
  %685 = vmatpush1.bf16.msra.mxu0 0
  %686 = vmatprep.subr.bf16.mxu0 0
  %687 = vmatpush1.bf16.msra.mxu0 %v647
  %688 = vmatprep.subr.bf16.mxu0 0
  %689 = vmatpush1.bf16.msra.mxu0 %v646
  %690 = vmatprep.subr.bf16.mxu0 0
  %691 = vmatpush2.bf16.msra.mxu0 0
  %692 = vmatprep.subr.bf16.mxu0 0
  %693 = vmatpush2.bf16.msra.mxu0 0
  %694 = vmatprep.subr.bf16.mxu0 0
  %695 = vmatpush2.bf16.msra.mxu0 0
  %696 = vmatprep.subr.bf16.mxu0 0
  %697 = vmatpush2.bf16.msra.mxu0 0
  %698 = vmatprep.subr.bf16.mxu0 0
  %699 = vmatpush2.bf16.msra.mxu0 0
  %700 = vmatprep.subr.bf16.mxu0 0
  %701 = vmatpush2.bf16.msra.mxu0 0
  %702 = vmatprep.subr.bf16.mxu0 0
  %703 = vmatpush2.bf16.msra.mxu0 0
  %704 = vmatprep.subr.bf16.mxu0 0
  %705 = vmatpush2.bf16.msra.mxu0 0
  %706 = vmatprep.mubr.bf16.mxu0 0
  %707 = vmatmul.mubr.bf16.gmra.mxu0 %v651
  %v708 = vpop.f32.mrf.mxu0
  %v709 = vadd.f32 0.0, %v708
  %v710 = vpop.f32.mrf.mxu0
  %v711 = vpop.f32.mrf.mxu0
  %v712 = vadd.f32 0.0, %v711
  %v713 = vpop.f32.mrf.mxu0
  %714 = vmatprep.mubr.bf16.mxu0 0
  %715 = vmatmul.mubr.bf16.gmra.mxu0 %v654
  %v716 = vpop.f32.mrf.mxu0
  %v717 = vadd.f32 0.0, %v716
  %v718 = vpop.f32.mrf.mxu0
  %v719 = vpop.f32.mrf.mxu0
  %v720 = vadd.f32 0.0, %v719
  %v721 = vpop.f32.mrf.mxu0
  %722 = vmatprep.mubr.bf16.mxu0 0
  %723 = vmatmul.mubr.bf16.gmra.mxu0 %v657
  %v724 = vpop.f32.mrf.mxu0
  %v725 = vadd.f32 0.0, %v724
  %v726 = vpop.f32.mrf.mxu0
  %v727 = vpop.f32.mrf.mxu0
  %v728 = vadd.f32 0.0, %v727
  %v729 = vpop.f32.mrf.mxu0
  %730 = vmatprep.mubr.bf16.mxu0 0
  %731 = vmatmul.mubr.bf16.gmra.mxu0 %v660
  %v732 = vpop.f32.mrf.mxu0
  %v733 = vadd.f32 0.0, %v732
  %v734 = vpop.f32.mrf.mxu0
  %v735 = vpop.f32.mrf.mxu0
  %v736 = vadd.f32 0.0, %v735
  %v737 = vpop.f32.mrf.mxu0
  %738 = vmatprep.mubr.bf16.mxu0 0
  %739 = vmatmul.mubr.bf16.gmra.mxu0 %v663
  %v740 = vpop.f32.mrf.mxu0
  %v741 = vadd.f32 0.0, %v740
  %v742 = vpop.f32.mrf.mxu0
  %v743 = vpop.f32.mrf.mxu0
  %v744 = vadd.f32 0.0, %v743
  %v745 = vpop.f32.mrf.mxu0
  %746 = vmatprep.mubr.bf16.mxu0 0
  %747 = vmatmul.mubr.bf16.gmra.mxu0 %v666
  %v748 = vpop.f32.mrf.mxu0
  %v749 = vadd.f32 0.0, %v748
  %v750 = vpop.f32.mrf.mxu0
  %v751 = vpop.f32.mrf.mxu0
  %v752 = vadd.f32 0.0, %v751
  %v753 = vpop.f32.mrf.mxu0
  %754 = vmatprep.mubr.bf16.mxu0 0
  %755 = vmatmul.mubr.bf16.gmra.mxu0 %v669
  %v756 = vpop.f32.mrf.mxu0
  %v757 = vadd.f32 0.0, %v756
  %v758 = vpop.f32.mrf.mxu0
  %v759 = vpop.f32.mrf.mxu0
  %v760 = vadd.f32 0.0, %v759
  %v761 = vpop.f32.mrf.mxu0
  %762 = vmatprep.mubr.bf16.mxu0 0
  %763 = vmatmul.mubr.bf16.gmra.mxu0 %v672
  %v764 = vpop.f32.mrf.mxu0
  %v765 = vadd.f32 0.0, %v764
  %v766 = vpop.f32.mrf.mxu0
  %v767 = vpop.f32.mrf.mxu0
  %v768 = vadd.f32 0.0, %v767
  %v769 = vpop.f32.mrf.mxu0
  %770 = vdwg.mxu0
  %v771 = vadd.f32 %v561, %v709
  %v772 = vadd.f32 %v562, %v712
  %v773 = vadd.f32 %v563, %v717
  %v774 = vadd.f32 %v564, %v720
  %v775 = vadd.f32 %v565, %v725
  %v776 = vadd.f32 %v566, %v728
  %v777 = vadd.f32 %v567, %v733
  %v778 = vadd.f32 %v568, %v736
  %v779 = vadd.f32 %v569, %v741
  %v780 = vadd.f32 %v570, %v744
  %v781 = vadd.f32 %v571, %v749
  %v782 = vadd.f32 %v572, %v752
  %v783 = vadd.f32 %v573, %v757
  %v784 = vadd.f32 %v574, %v760
  %v785 = vadd.f32 %v575, %v765
  %v786 = vadd.f32 %v576, %v768
  %v787 = vld [vmem:[%s0 + $0x10] sm:$0xf]
  %v788 = vld [vmem:[%s0 + $0x14] sm:$0xf]
  %v789 = vld [vmem:[%s0 + $0x18] sm:$0xf]
  %v790 = vld [vmem:[%s0 + $0x1c] sm:$0xf]
  %v791 = vld [vmem:[%s0 + $0x20] sm:$0xf]
  %v792 = vld [vmem:[%s0 + $0x24] sm:$0xf]
  %v793 = vld [vmem:[%s0 + $0x28] sm:$0xf]
  %v794 = vld [vmem:[%s0 + $0x2c] sm:$0xf]
  %v795 = vld [vmem:[%s0 + $0x30] sm:$0xf]
  %v796 = vld [vmem:[%s0 + $0x34] sm:$0xf]
  %v797 = vld [vmem:[%s0 + $0x38] sm:$0xf]
  %v798 = vld [vmem:[%s0 + $0x3c] sm:$0xf]
  %v799 = vld [vmem:[%s0 + $0x40] sm:$0xf]
  %v800 = vld [vmem:[%s0 + $0x44] sm:$0xf]
  %v801 = vld [vmem:[%s0 + $0x48] sm:$0xf]
  %v802 = vld [vmem:[%s0 + $0x4c] sm:$0xf]
  %s803 = scalar_lea.vmem %s1, 64
  %v804 = vld [vmem:[%s803] sm:$0xf]
  %v805 = vld [vmem:[%s803 + $0x4] sm:$0xf]
  %v806 = vld [vmem:[%s803 + $0x8] sm:$0xf]
  %v807 = vld [vmem:[%s803 + $0xc] sm:$0xf]
  %v824 = vunpack.c.l.b16 %v787
  %v825 = vunpack.c.l.b16 %v788
  %v826 = vunpack.c.l.b16 %v789
  %v827 = vunpack.c.l.b16 %v790
  %v828 = vunpack.c.l.b16 %v791
  %v829 = vunpack.c.l.b16 %v792
  %v830 = vunpack.c.l.b16 %v793
  %v831 = vunpack.c.l.b16 %v794
  %v832 = vunpack.c.l.b16 %v795
  %v833 = vunpack.c.l.b16 %v796
  %v834 = vunpack.c.l.b16 %v797
  %v835 = vunpack.c.l.b16 %v798
  %v836 = vunpack.c.l.b16 %v799
  %v837 = vunpack.c.l.b16 %v800
  %v838 = vunpack.c.l.b16 %v801
  %v839 = vunpack.c.l.b16 %v802
  %v840 = vpack.c.b16 %v825, %v824
  %v841 = vpack.c.b16 %v827, %v826
  %v842 = vpack.c.b16 %v829, %v828
  %v843 = vpack.c.b16 %v831, %v830
  %v844 = vpack.c.b16 %v833, %v832
  %v845 = vpack.c.b16 %v835, %v834
  %v846 = vpack.c.b16 %v837, %v836
  %v847 = vpack.c.b16 %v839, %v838
  %v852 = vunpack.c.l.b16 %v804
  %v853 = vunpack.c.l.b16 %v805
  %v854 = vunpack.c.l.b16 %v806
  %v855 = vunpack.c.l.b16 %v807
  %v856 = vpack.c.b16 %v853, %v852
  %v857 = vpack.c.b16 %v855, %v854
  %v861 = vsel %vm102, %v840, 0
  %v864 = vsel %vm102, %v841, 0
  %v867 = vsel %vm102, %v842, 0
  %v870 = vsel %vm102, %v843, 0
  %v873 = vsel %vm102, %v844, 0
  %v876 = vsel %vm102, %v845, 0
  %v879 = vsel %vm102, %v846, 0
  %v882 = vsel %vm102, %v847, 0
  %884 = vmatprep.subr.bf16.mxu0 0
  %885 = vmatpush1.bf16.msra.mxu0 0
  %886 = vmatprep.subr.bf16.mxu0 0
  %887 = vmatpush1.bf16.msra.mxu0 0
  %888 = vmatprep.subr.bf16.mxu0 0
  %889 = vmatpush1.bf16.msra.mxu0 0
  %890 = vmatprep.subr.bf16.mxu0 0
  %891 = vmatpush1.bf16.msra.mxu0 0
  %892 = vmatprep.subr.bf16.mxu0 0
  %893 = vmatpush1.bf16.msra.mxu0 0
  %894 = vmatprep.subr.bf16.mxu0 0
  %895 = vmatpush1.bf16.msra.mxu0 0
  %896 = vmatprep.subr.bf16.mxu0 0
  %897 = vmatpush1.bf16.msra.mxu0 %v857
  %898 = vmatprep.subr.bf16.mxu0 0
  %899 = vmatpush1.bf16.msra.mxu0 %v856
  %900 = vmatprep.subr.bf16.mxu0 0
  %901 = vmatpush2.bf16.msra.mxu0 0
  %902 = vmatprep.subr.bf16.mxu0 0
  %903 = vmatpush2.bf16.msra.mxu0 0
  %904 = vmatprep.subr.bf16.mxu0 0
  %905 = vmatpush2.bf16.msra.mxu0 0
  %906 = vmatprep.subr.bf16.mxu0 0
  %907 = vmatpush2.bf16.msra.mxu0 0
  %908 = vmatprep.subr.bf16.mxu0 0
  %909 = vmatpush2.bf16.msra.mxu0 0
  %910 = vmatprep.subr.bf16.mxu0 0
  %911 = vmatpush2.bf16.msra.mxu0 0
  %912 = vmatprep.subr.bf16.mxu0 0
  %913 = vmatpush2.bf16.msra.mxu0 0
  %914 = vmatprep.subr.bf16.mxu0 0
  %915 = vmatpush2.bf16.msra.mxu0 0
  %916 = vmatprep.mubr.bf16.mxu0 0
  %917 = vmatmul.mubr.bf16.gmra.mxu0 %v861
  %v918 = vpop.f32.mrf.mxu0
  %v919 = vadd.f32 0.0, %v918
  %v920 = vpop.f32.mrf.mxu0
  %v921 = vpop.f32.mrf.mxu0
  %v922 = vadd.f32 0.0, %v921
  %v923 = vpop.f32.mrf.mxu0
  %924 = vmatprep.mubr.bf16.mxu0 0
  %925 = vmatmul.mubr.bf16.gmra.mxu0 %v864
  %v926 = vpop.f32.mrf.mxu0
  %v927 = vadd.f32 0.0, %v926
  %v928 = vpop.f32.mrf.mxu0
  %v929 = vpop.f32.mrf.mxu0
  %v930 = vadd.f32 0.0, %v929
  %v931 = vpop.f32.mrf.mxu0
  %932 = vmatprep.mubr.bf16.mxu0 0
  %933 = vmatmul.mubr.bf16.gmra.mxu0 %v867
  %v934 = vpop.f32.mrf.mxu0
  %v935 = vadd.f32 0.0, %v934
  %v936 = vpop.f32.mrf.mxu0
  %v937 = vpop.f32.mrf.mxu0
  %v938 = vadd.f32 0.0, %v937
  %v939 = vpop.f32.mrf.mxu0
  %940 = vmatprep.mubr.bf16.mxu0 0
  %941 = vmatmul.mubr.bf16.gmra.mxu0 %v870
  %v942 = vpop.f32.mrf.mxu0
  %v943 = vadd.f32 0.0, %v942
  %v944 = vpop.f32.mrf.mxu0
  %v945 = vpop.f32.mrf.mxu0
  %v946 = vadd.f32 0.0, %v945
  %v947 = vpop.f32.mrf.mxu0
  %948 = vmatprep.mubr.bf16.mxu0 0
  %949 = vmatmul.mubr.bf16.gmra.mxu0 %v873
  %v950 = vpop.f32.mrf.mxu0
  %v951 = vadd.f32 0.0, %v950
  %v952 = vpop.f32.mrf.mxu0
  %v953 = vpop.f32.mrf.mxu0
  %v954 = vadd.f32 0.0, %v953
  %v955 = vpop.f32.mrf.mxu0
  %956 = vmatprep.mubr.bf16.mxu0 0
  %957 = vmatmul.mubr.bf16.gmra.mxu0 %v876
  %v958 = vpop.f32.mrf.mxu0
  %v959 = vadd.f32 0.0, %v958
  %v960 = vpop.f32.mrf.mxu0
  %v961 = vpop.f32.mrf.mxu0
  %v962 = vadd.f32 0.0, %v961
  %v963 = vpop.f32.mrf.mxu0
  %964 = vmatprep.mubr.bf16.mxu0 0
  %965 = vmatmul.mubr.bf16.gmra.mxu0 %v879
  %v966 = vpop.f32.mrf.mxu0
  %v967 = vadd.f32 0.0, %v966
  %v968 = vpop.f32.mrf.mxu0
  %v969 = vpop.f32.mrf.mxu0
  %v970 = vadd.f32 0.0, %v969
  %v971 = vpop.f32.mrf.mxu0
  %972 = vmatprep.mubr.bf16.mxu0 0
  %973 = vmatmul.mubr.bf16.gmra.mxu0 %v882
  %v974 = vpop.f32.mrf.mxu0
  %v975 = vadd.f32 0.0, %v974
  %v976 = vpop.f32.mrf.mxu0
  %v977 = vpop.f32.mrf.mxu0
  %v978 = vadd.f32 0.0, %v977
  %v979 = vpop.f32.mrf.mxu0
  %980 = vdwg.mxu0
  %v981 = vadd.f32 %v771, %v919
  %v982 = vadd.f32 %v772, %v922
  %v983 = vadd.f32 %v773, %v927
  %v984 = vadd.f32 %v774, %v930
  %v985 = vadd.f32 %v775, %v935
  %v986 = vadd.f32 %v776, %v938
  %v987 = vadd.f32 %v777, %v943
  %v988 = vadd.f32 %v778, %v946
  %v989 = vadd.f32 %v779, %v951
  %v990 = vadd.f32 %v780, %v954
  %v991 = vadd.f32 %v781, %v959
  %v992 = vadd.f32 %v782, %v962
  %v993 = vadd.f32 %v783, %v967
  %v994 = vadd.f32 %v784, %v970
  %v995 = vadd.f32 %v785, %v975
  %v996 = vadd.f32 %v786, %v978
  %v997 = vld [vmem:[%s2] sm:$0xff]
  %v998 = vld [vmem:[%s2 + $0x8] sm:$0xff]
  %v1001 = vcombine.high %v997, %v997
  %v1003 = vunpack.c.l.s4 1966171168
  %v1004 = vunpack.c.0.s8 %v1003
  %v1005 = vlaneseq
  %v1006 = vshrl.u32 %v1005, 7
  %v1007 = vsub.s32 %v1004, %v1006
  %v1008 = vrot.slane %v997, %v1007
  %v1010 = vunpack.c.l.s4 1966171168
  %v1011 = vunpack.c.0.s8 %v1010
  %v1012 = vlaneseq
  %v1013 = vshrl.u32 %v1012, 7
  %v1014 = vsub.s32 %v1011, %v1013
  %v1015 = vrot.slane %v1001, %v1014
  %v1016 = vcombine.high %v1008, %v1008
  %v1017 = vcombine.high %v1015, %v1015
  %v1019 = vunpack.c.l.s4 1966171168
  %v1020 = vunpack.c.0.s8 %v1019
  %v1021 = vlaneseq
  %v1022 = vshrl.u32 %v1021, 7
  %v1023 = vsub.s32 %v1020, %v1022
  %v1024 = vrot.slane %v1008, %v1023
  %v1026 = vunpack.c.l.s4 1966171168
  %v1027 = vunpack.c.0.s8 %v1026
  %v1028 = vlaneseq
  %v1029 = vshrl.u32 %v1028, 7
  %v1030 = vsub.s32 %v1027, %v1029
  %v1031 = vrot.slane %v1015, %v1030
  %v1033 = vunpack.c.l.s4 1966171168
  %v1034 = vunpack.c.0.s8 %v1033
  %v1035 = vlaneseq
  %v1036 = vshrl.u32 %v1035, 7
  %v1037 = vsub.s32 %v1034, %v1036
  %v1038 = vrot.slane %v1016, %v1037
  %v1040 = vunpack.c.l.s4 1966171168
  %v1041 = vunpack.c.0.s8 %v1040
  %v1042 = vlaneseq
  %v1043 = vshrl.u32 %v1042, 7
  %v1044 = vsub.s32 %v1041, %v1043
  %v1045 = vrot.slane %v1017, %v1044
  %v1046 = vcombine.high %v1024, %v1024
  %v1047 = vcombine.high %v1031, %v1031
  %v1048 = vcombine.high %v1038, %v1038
  %v1049 = vcombine.high %v1045, %v1045
  %v1050 = vcombine.high %v998, %v998
  %v1052 = vunpack.c.l.s4 1966171168
  %v1053 = vunpack.c.0.s8 %v1052
  %v1054 = vlaneseq
  %v1055 = vshrl.u32 %v1054, 7
  %v1056 = vsub.s32 %v1053, %v1055
  %v1057 = vrot.slane %v998, %v1056
  %v1059 = vunpack.c.l.s4 1966171168
  %v1060 = vunpack.c.0.s8 %v1059
  %v1061 = vlaneseq
  %v1062 = vshrl.u32 %v1061, 7
  %v1063 = vsub.s32 %v1060, %v1062
  %v1064 = vrot.slane %v1050, %v1063
  %v1065 = vcombine.high %v1057, %v1057
  %v1066 = vcombine.high %v1064, %v1064
  %v1068 = vunpack.c.l.s4 1966171168
  %v1069 = vunpack.c.0.s8 %v1068
  %v1070 = vlaneseq
  %v1071 = vshrl.u32 %v1070, 7
  %v1072 = vsub.s32 %v1069, %v1071
  %v1073 = vrot.slane %v1057, %v1072
  %v1075 = vunpack.c.l.s4 1966171168
  %v1076 = vunpack.c.0.s8 %v1075
  %v1077 = vlaneseq
  %v1078 = vshrl.u32 %v1077, 7
  %v1079 = vsub.s32 %v1076, %v1078
  %v1080 = vrot.slane %v1064, %v1079
  %v1082 = vunpack.c.l.s4 1966171168
  %v1083 = vunpack.c.0.s8 %v1082
  %v1084 = vlaneseq
  %v1085 = vshrl.u32 %v1084, 7
  %v1086 = vsub.s32 %v1083, %v1085
  %v1087 = vrot.slane %v1065, %v1086
  %v1089 = vunpack.c.l.s4 1966171168
  %v1090 = vunpack.c.0.s8 %v1089
  %v1091 = vlaneseq
  %v1092 = vshrl.u32 %v1091, 7
  %v1093 = vsub.s32 %v1090, %v1092
  %v1094 = vrot.slane %v1066, %v1093
  %v1095 = vcombine.high %v1073, %v1073
  %v1096 = vcombine.high %v1080, %v1080
  %v1097 = vcombine.high %v1087, %v1087
  %v1098 = vcombine.high %v1094, %v1094
  %v1099 = vlaneseq
  %v1100 = vshrl.u32 %v1099, 7
  %v1101 = vsub.s32 0, %v1100
  %v1102 = vrot.slane %v1024, %v1101
  %v1103 = vlaneseq
  %v1104 = vshrl.u32 %v1103, 7
  %v1105 = vsub.s32 0, %v1104
  %v1106 = vrot.slane %v1038, %v1105
  %v1107 = vlaneseq
  %v1108 = vshrl.u32 %v1107, 7
  %v1109 = vsub.s32 0, %v1108
  %v1110 = vrot.slane %v1046, %v1109
  %v1111 = vlaneseq
  %v1112 = vshrl.u32 %v1111, 7
  %v1113 = vsub.s32 0, %v1112
  %v1114 = vrot.slane %v1048, %v1113
  %v1115 = vlaneseq
  %v1116 = vshrl.u32 %v1115, 7
  %v1117 = vsub.s32 0, %v1116
  %v1118 = vrot.slane %v1031, %v1117
  %v1119 = vlaneseq
  %v1120 = vshrl.u32 %v1119, 7
  %v1121 = vsub.s32 0, %v1120
  %v1122 = vrot.slane %v1045, %v1121
  %v1123 = vlaneseq
  %v1124 = vshrl.u32 %v1123, 7
  %v1125 = vsub.s32 0, %v1124
  %v1126 = vrot.slane %v1047, %v1125
  %v1127 = vlaneseq
  %v1128 = vshrl.u32 %v1127, 7
  %v1129 = vsub.s32 0, %v1128
  %v1130 = vrot.slane %v1049, %v1129
  %v1131 = vlaneseq
  %v1132 = vshrl.u32 %v1131, 7
  %v1133 = vsub.s32 0, %v1132
  %v1134 = vrot.slane %v1073, %v1133
  %v1135 = vlaneseq
  %v1136 = vshrl.u32 %v1135, 7
  %v1137 = vsub.s32 0, %v1136
  %v1138 = vrot.slane %v1087, %v1137
  %v1139 = vlaneseq
  %v1140 = vshrl.u32 %v1139, 7
  %v1141 = vsub.s32 0, %v1140
  %v1142 = vrot.slane %v1095, %v1141
  %v1143 = vlaneseq
  %v1144 = vshrl.u32 %v1143, 7
  %v1145 = vsub.s32 0, %v1144
  %v1146 = vrot.slane %v1097, %v1145
  %v1147 = vlaneseq
  %v1148 = vshrl.u32 %v1147, 7
  %v1149 = vsub.s32 0, %v1148
  %v1150 = vrot.slane %v1080, %v1149
  %v1151 = vlaneseq
  %v1152 = vshrl.u32 %v1151, 7
  %v1153 = vsub.s32 0, %v1152
  %v1154 = vrot.slane %v1094, %v1153
  %v1155 = vlaneseq
  %v1156 = vshrl.u32 %v1155, 7
  %v1157 = vsub.s32 0, %v1156
  %v1158 = vrot.slane %v1096, %v1157
  %v1159 = vlaneseq
  %v1160 = vshrl.u32 %v1159, 7
  %v1161 = vsub.s32 0, %v1160
  %v1162 = vrot.slane %v1098, %v1161
  %v1179 = vadd.f32 %v981, %v1102
  %v1180 = vadd.f32 %v982, %v1106
  %v1181 = vadd.f32 %v983, %v1110
  %v1182 = vadd.f32 %v984, %v1114
  %v1183 = vadd.f32 %v985, %v1118
  %v1184 = vadd.f32 %v986, %v1122
  %v1185 = vadd.f32 %v987, %v1126
  %v1186 = vadd.f32 %v988, %v1130
  %v1187 = vadd.f32 %v989, %v1134
  %v1188 = vadd.f32 %v990, %v1138
  %v1189 = vadd.f32 %v991, %v1142
  %v1190 = vadd.f32 %v992, %v1146
  %v1191 = vadd.f32 %v993, %v1150
  %v1192 = vadd.f32 %v994, %v1154
  %v1193 = vadd.f32 %v995, %v1158
  %v1194 = vadd.f32 %v996, %v1162
  %v1195 = vmax.f32 %v1179, %v1183
  %v1196 = vmax.f32 %v1180, %v1184
  %v1197 = vmax.f32 %v1181, %v1185
  %v1198 = vmax.f32 %v1182, %v1186
  %v1199 = vmax.f32 %v1195, %v1187
  %v1200 = vmax.f32 %v1196, %v1188
  %v1201 = vmax.f32 %v1197, %v1189
  %v1202 = vmax.f32 %v1198, %v1190
  %v1203 = vmax.f32 %v1199, %v1191
  %v1204 = vmax.f32 %v1200, %v1192
  %v1205 = vmax.f32 %v1201, %v1193
  %v1206 = vmax.f32 %v1202, %v1194
  %v1207 = vmax.f32 %v1203, %v1204
  %v1208 = vmax.f32 %v1205, %v1206
  %v1209 = vmax.f32 %v1207, %v1208
  %p1210 = scmp.eq.s32.totalorder 0, 0
  // Predicated region
  $region26: #{_lambda_.1} parent=0 // pred_check
    %p1211 = pneg %p1210
  $region27: #{_lambda_.1} parent=0 // pred_check_branch
    %1213 = sbr.rel (%p1211) target = $region29
  $region28: #{_lambda_.1} parent=0 // pred_region
    %1214 = vst [vmem:[#allocation2] sm:$0xff] -1e+30
  $region29: #{_lambda_.1} parent=0 // pred_fallthru
    _
  %v1215 = vld [vmem:[#allocation2] sm:$0xff]
  %v1216 = vmax.f32 %v1215, %v1209
  %1217 = vst [vmem:[#allocation2] sm:$0xff] %v1216
  // Predicated region
  $region30: #{_lambda_.1} parent=0 // pred_check
    %p1218 = pneg %p1210
  $region31: #{_lambda_.1} parent=0 // pred_check_branch
    %1220 = sbr.rel (%p1218) target = $region33
  $region32: #{_lambda_.1} parent=0 // pred_region
    %v1221 = vld [vmem:[#allocation2] sm:$0xff]
    %v1222 = vld [vmem:[%s3] sm:$0x1]
    %v1224 = vlaneseq
    %v1225 = vshrl.u32 %v1224, 7
    %v1226 = vsub.s32 0, %v1225
    %v1227 = vrot.slane %v1222, %v1226
    %v1229 = vadd.f32 %v1221, %v1227
    %v1230 = vtanh.pop %v1229
    %v1231 = vpack.c.bf16 %v1230, %v1230
    %v1232 = vld [vmem:[%s4] sm:$0xf]
    %v1233 = vld [vmem:[%s4 + $0x4] sm:$0xf]
    %v1234 = vld [vmem:[%s4 + $0x8] sm:$0xf]
    %v1235 = vld [vmem:[%s4 + $0xc] sm:$0xf]
    %v1236 = vld [vmem:[%s4 + $0x10] sm:$0xf]
    %v1237 = vld [vmem:[%s4 + $0x14] sm:$0xf]
    %v1238 = vld [vmem:[%s4 + $0x18] sm:$0xf]
    %v1239 = vld [vmem:[%s4 + $0x1c] sm:$0xf]
    %v1240 = vld [vmem:[%s4 + $0x20] sm:$0xf]
    %v1241 = vld [vmem:[%s4 + $0x24] sm:$0xf]
    %v1242 = vld [vmem:[%s4 + $0x28] sm:$0xf]
    %v1243 = vld [vmem:[%s4 + $0x2c] sm:$0xf]
    %v1244 = vld [vmem:[%s4 + $0x30] sm:$0xf]
    %v1245 = vld [vmem:[%s4 + $0x34] sm:$0xf]
    %v1246 = vld [vmem:[%s4 + $0x38] sm:$0xf]
    %v1247 = vld [vmem:[%s4 + $0x3c] sm:$0xf]
    %v1248 = vld [vmem:[%s5] sm:$0x1]
    %v1250 = vlaneseq
    %v1251 = vshrl.u32 %v1250, 7
    %v1252 = vsub.s32 0, %v1251
    %v1253 = vrot.slane %v1248, %v1252
    %v1271 = vunpack.c.l.b16 %v1232
    %v1272 = vunpack.c.l.b16 %v1233
    %v1273 = vunpack.c.l.b16 %v1234
    %v1274 = vunpack.c.l.b16 %v1235
    %v1275 = vunpack.c.l.b16 %v1236
    %v1276 = vunpack.c.l.b16 %v1237
    %v1277 = vunpack.c.l.b16 %v1238
    %v1278 = vunpack.c.l.b16 %v1239
    %v1279 = vunpack.c.l.b16 %v1240
    %v1280 = vunpack.c.l.b16 %v1241
    %v1281 = vunpack.c.l.b16 %v1242
    %v1282 = vunpack.c.l.b16 %v1243
    %v1283 = vunpack.c.l.b16 %v1244
    %v1284 = vunpack.c.l.b16 %v1245
    %v1285 = vunpack.c.l.b16 %v1246
    %v1286 = vunpack.c.l.b16 %v1247
    %v1287 = vpack.c.b16 %v1272, %v1271
    %v1288 = vpack.c.b16 %v1274, %v1273
    %v1289 = vpack.c.b16 %v1276, %v1275
    %v1290 = vpack.c.b16 %v1278, %v1277
    %v1291 = vpack.c.b16 %v1280, %v1279
    %v1292 = vpack.c.b16 %v1282, %v1281
    %v1293 = vpack.c.b16 %v1284, %v1283
    %v1294 = vpack.c.b16 %v1286, %v1285
    %1303 = vmatprep.subr.bf16.mxu0 0
    %1304 = vmatpush1.bf16.msra.mxu0 %v1294
    %1305 = vmatprep.subr.bf16.mxu0 0
    %1306 = vmatpush1.bf16.msra.mxu0 %v1293
    %1307 = vmatprep.subr.bf16.mxu0 0
    %1308 = vmatpush1.bf16.msra.mxu0 %v1292
    %1309 = vmatprep.subr.bf16.mxu0 0
    %1310 = vmatpush1.bf16.msra.mxu0 %v1291
    %1311 = vmatprep.subr.bf16.mxu0 0
    %1312 = vmatpush1.bf16.msra.mxu0 %v1290
    %1313 = vmatprep.subr.bf16.mxu0 0
    %1314 = vmatpush1.bf16.msra.mxu0 %v1289
    %1315 = vmatprep.subr.bf16.mxu0 0
    %1316 = vmatpush1.bf16.msra.mxu0 %v1288
    %1317 = vmatprep.subr.bf16.mxu0 0
    %1318 = vmatpush1.bf16.msra.mxu0 %v1287
    %1319 = vmatprep.subr.bf16.mxu0 0
    %1320 = vmatpush2.bf16.msra.mxu0 0
    %1321 = vmatprep.subr.bf16.mxu0 0
    %1322 = vmatpush2.bf16.msra.mxu0 0
    %1323 = vmatprep.subr.bf16.mxu0 0
    %1324 = vmatpush2.bf16.msra.mxu0 0
    %1325 = vmatprep.subr.bf16.mxu0 0
    %1326 = vmatpush2.bf16.msra.mxu0 0
    %1327 = vmatprep.subr.bf16.mxu0 0
    %1328 = vmatpush2.bf16.msra.mxu0 0
    %1329 = vmatprep.subr.bf16.mxu0 0
    %1330 = vmatpush2.bf16.msra.mxu0 0
    %1331 = vmatprep.subr.bf16.mxu0 0
    %1332 = vmatpush2.bf16.msra.mxu0 0
    %1333 = vmatprep.subr.bf16.mxu0 0
    %1334 = vmatpush2.bf16.msra.mxu0 0
    %1335 = vmatprep.mubr.bf16.mxu0 0
    %1336 = vmatmul.mubr.bf16.gmra.mxu0 %v1231
    %v1337 = vpop.f32.mrf.mxu0
    %v1338 = vadd.f32 %v1253, %v1337
    %v1339 = vpop.f32.mrf.mxu0
    %v1340 = vpop.f32.mrf.mxu0
    %v1341 = vpop.f32.mrf.mxu0
    %1342 = vdwg.mxu0
    %1343 = vst [vmem:[%s6] sm:$0xff] %v1338
  $region33: #{_lambda_.1} parent=0 // pred_fallthru
    _
  // Predicated region
  $region34: #{_lambda_.1} parent=0 // pred_check
    _
  $region35: #{_lambda_.1} parent=0 // pred_check_branch
    %1345 = sbr.rel (0) target = $region37
  $region36: #{_lambda_.1} parent=0 // pred_region
    _
  $region37: #{_lambda_.1} parent=0 // pred_fallthru
    _
  // Predicated region
  $region38: #{_lambda_.1} parent=0 // pred_check
    _
  $region39: #{_lambda_.1} parent=0 // pred_check_branch
    %1347 = sbr.rel (0) target = $region41
  $region40: #{_lambda_.1} parent=0 // pred_region
    _
  $region41: #{_lambda_.1} parent=0 // pred_fallthru
    _

</llo_original>
